<compile_context>
chip_gen: v6e
topology: v6e:2x2x1
jax: 0.10.0
libtpu: 0.0.40
codegen_flags: <defaults>
</compile_context>

<pallas_src>
import math

import jax
import jax.numpy as jnp
from jax.experimental import pallas as pl
from jax.experimental.pallas import tpu as pltpu

# Above this total size, split the copy into a few concurrently-issued DMAs.
_CHUNK_THRESHOLD_BYTES = 64 * 1024 * 1024
_MAX_CHUNKS = 8


def _chunk_plan(shape, dtype):
    """Static plan of leading-axis chunks (start, size) for the HBM->HBM copy.

    Returns None for "one DMA over the whole array".
    """
    itemsize = jnp.dtype(dtype).itemsize
    total_bytes = (int(math.prod(shape)) if shape else 1) * itemsize
    if len(shape) == 0 or shape[0] <= 1 or total_bytes <= _CHUNK_THRESHOLD_BYTES:
        return None
    rows = shape[0]
    nc = min(rows, _MAX_CHUNKS)
    chunk_rows = -(-rows // nc)  # ceil div
    chunks = []
    start = 0
    while start < rows:
        size = min(chunk_rows, rows - start)
        chunks.append((start, size))
        start += size
    return tuple(chunks)


def _make_dma_copy_kernel(chunks):
    """Kernel body: direct HBM->HBM async copies, start all then wait all."""

    def kernel(x_hbm, o_hbm, sem):
        copies = []
        if chunks is None:
            copies.append(pltpu.make_async_copy(x_hbm, o_hbm, sem.at[0]))
        else:
            for c, (start, size) in enumerate(chunks):
                copies.append(
                    pltpu.make_async_copy(
                        x_hbm.at[pl.ds(start, size)],
                        o_hbm.at[pl.ds(start, size)],
                        sem.at[c],
                    )
                )
        # Issue every DMA before waiting on any -> issue latency is overlapped.
        for cp in copies:
            cp.start()
        for cp in copies:
            cp.wait()

    return kernel


def _pallas_identity_copy(x: jax.Array) -> jax.Array:
    """HBM->HBM DMA memcpy via a single Pallas call (no grid, no VMEM tiles)."""
    chunks = _chunk_plan(x.shape, x.dtype)
    nsem = 1 if chunks is None else len(chunks)
    return pl.pallas_call(
        _make_dma_copy_kernel(chunks),
        out_shape=jax.ShapeDtypeStruct(x.shape, x.dtype),
        in_specs=[pl.BlockSpec(memory_space=pl.ANY)],
        out_specs=pl.BlockSpec(memory_space=pl.ANY),
        scratch_shapes=[pltpu.SemaphoreType.DMA((nsem,))],
    )(x)


def identity_pallas(x: jax.Array, *, use_kernel: bool = True) -> jax.Array:
    """Identity.forward(x) -> x.

    use_kernel=False is the production path: returns x with zero HBM traffic
    (the only way to beat the memcpy roofline).  use_kernel=True performs the
    copy as a direct HBM->HBM DMA inside a Pallas kernel.
    """
    if not use_kernel:
        return x
    if x.ndim == 0:
        # DMA a tiny 2-D view for the scalar edge case.
        return _pallas_identity_copy(x.reshape(1, 1)).reshape(())
    return _pallas_identity_copy(x)


if __name__ == "__main__":
    key = jax.random.PRNGKey(0)

    # Small NCHW-shaped input consistent with the CNN pass-through usage.
    x = jax.random.normal(key, (2, 4, 16, 16), dtype=jnp.float32)

    # Kernel path (direct HBM->HBM DMA copy).
    y = jax.block_until_ready(jax.jit(identity_pallas)(x))
    assert y.shape == x.shape and y.dtype == x.dtype
    assert bool(jnp.array_equal(y, x))

    # Robustness checks on shapes that broke the old tiled path: 1-D and 2-D.
    x1 = jax.random.normal(key, (777,), dtype=jnp.float32)
    y1 = jax.block_until_ready(identity_pallas(x1))
    assert bool(jnp.array_equal(y1, x1))

    x2 = jax.random.normal(key, (5, 300), dtype=jnp.bfloat16)
    y2 = jax.block_until_ready(identity_pallas(x2))
    assert bool(jnp.array_equal(y2, x2))

    # Zero-cost production path: no kernel, no copy.
    y0 = identity_pallas(x, use_kernel=False)
    assert y0 is x

    print("KERNEL_OK")
</pallas_src>

<mosaic_0001>
module attributes {stable_mosaic.version = 11 : i64} {
  func.func @kernel(%arg0: memref<2x4x16x16xf32, #tpu.memory_space<any>>, %arg1: memref<2x4x16x16xf32, #tpu.memory_space<any>>, %arg2: memref<1x!tpu.dma_semaphore, #tpu.memory_space<semaphore_mem>>) attributes {dimension_semantics = [], scalar_prefetch = 0 : i64, scratch_operands = 1 : i64, tpu.core_type = #tpu.core_type<tc>} {
    %c0_i32 = arith.constant 0 : i32
    %0 = tpu.memref_slice %arg2[%c0_i32] : memref<1x!tpu.dma_semaphore, #tpu.memory_space<semaphore_mem>> -> memref<1x!tpu.dma_semaphore, #tpu.memory_space<semaphore_mem>>
    %1 = tpu.memref_squeeze %0 : memref<1x!tpu.dma_semaphore, #tpu.memory_space<semaphore_mem>> -> memref<!tpu.dma_semaphore, #tpu.memory_space<semaphore_mem>>
    tpu.enqueue_dma source(%arg0 : memref<2x4x16x16xf32, #tpu.memory_space<any>>) target(%arg1 : memref<2x4x16x16xf32, #tpu.memory_space<any>>) target_semaphore(%1 : memref<!tpu.dma_semaphore, #tpu.memory_space<semaphore_mem>>)
    %c0_i32_0 = arith.constant 0 : i32
    %2 = tpu.memref_slice %arg2[%c0_i32_0] : memref<1x!tpu.dma_semaphore, #tpu.memory_space<semaphore_mem>> -> memref<1x!tpu.dma_semaphore, #tpu.memory_space<semaphore_mem>>
    %3 = tpu.memref_squeeze %2 : memref<1x!tpu.dma_semaphore, #tpu.memory_space<semaphore_mem>> -> memref<!tpu.dma_semaphore, #tpu.memory_space<semaphore_mem>>
    tpu.wait_dma2 semaphore(%3 : memref<!tpu.dma_semaphore, #tpu.memory_space<semaphore_mem>>) src(%arg0 : memref<2x4x16x16xf32, #tpu.memory_space<any>>) dst(%arg1 : memref<2x4x16x16xf32, #tpu.memory_space<any>>)
    return
  }
}

</mosaic_0001>

<llo_original>
// kernel: identity_pallas.1
$region0: #{identity_pallas.1}
  #allocation0 [shape = 'u32[]', space=smem, size = 0x4, offset = 0x4, fixed_abs, tag = 'smem constant byte address 0x4 - core index']
  #allocation1 [shape = 'u32[144,128]{1,0:T(1,128)}', space=vmem, size = 0x12000, scoped, tag = 'internal scratch']
  #allocation2 [shape = 's32[1]{0}', space=sflag, size = 0x4, scoped, tag = 'scratch operand']
  #allocation3 [shape = 's32[]', space=sflag, size = 0x4, offset = 0, fixed_abs, tag = 'sflag constant byte address 0x0 - dummy sync flag']
  #allocation4 [shape = 'u32[0]{0}', space=smem, size = 0, offset = 0, fixed_abs, tag = 'smem constant byte address 0x0 - null']
  %s0 = inlined_call_operand.hbm [shape: f32[2,4,16,16], index: 0, kind: input, shape index: {}]
  %s1 = inlined_call_operand.hbm [shape: f32[2,4,16,16], index: 1, kind: output, shape index: {}]
  %s2 = sld [smem:[#allocation0]]
  $region2: #{identity_pallas.1} parent=0
    _
  %s4 = ssub.s32 1, %s2
  %s5 = scalar_select 0, %s4, %s2
  %s7 = sshll.u32 1, 14
  %s8 = sxor.u32 4294967295, %s7
  %12 = dma.general %s0, 2048, %s1, [#allocation2], 131072, [#allocation4], 0, 0
  %s13 = smul.u32 2, 4
  %s14 = smul.u32 %s13, 16
  %s15 = smul.u32 %s14, 1
  %s16 = sshll.u32 %s15, 4
  %17 = dma.done [#allocation2], %s16
  %18 = vsyncmov [#allocation2]
  %s19 = vpop.sfrf %18
  %p20 = scmp.eq.s32.totalorder %s19, 0
  %p21 = pneg %p20
  %23 = shalt.err (%p21)

</llo_original>
